<compile_context>
chip_gen: v7x
topology: tpu7x:2x2x1
jax: 0.10.0
libtpu: 0.0.40
codegen_flags: <defaults>
</compile_context>

<pallas_src>
import functools

import jax
import jax.numpy as jnp
from jax.experimental import pallas as pl
from jax.experimental.pallas import tpu as pltpu

LANES = 128


def _tpu_generation():
    try:
        kind = jax.devices()[0].device_kind.lower()
    except Exception:
        return 0
    for g in (7, 6, 5, 4):
        if f"v{g}" in kind:
            return g
    return 0


def _round_up(x, m):
    return ((x + m - 1) // m) * m


def _bce_pos(x, t):
    """t*log(x) + (1-t)*log(1-x) with PyTorch's -100 log clamps.

    Returned WITHOUT the leading minus sign; negated once at the very end
    together with the 1/N scale.
    """
    x = x.astype(jnp.float32)
    t = t.astype(jnp.float32)
    log_x = jnp.maximum(jnp.log(x), -100.0)
    log_1mx = jnp.maximum(jnp.log1p(-x), -100.0)
    # FMA-friendly form of t*log_x + (1-t)*log_1mx.
    return log_1mx + t * (log_x - log_1mx)


def _bce_kernel(x_ref, t_ref, o_ref, *, tile_r, masked, rem):
    q = _bce_pos(x_ref[...], t_ref[...])

    def reduce_to_8x128(v):
        if tile_r >= 64 and tile_r % 64 == 0:
            # 8 independent (8,128) accumulation chains -> no serial vadd chain
            # on the critical path at large tiles.
            v4 = v.reshape(8, tile_r // 64, 8, LANES)
            return v4.sum(axis=1).sum(axis=0)
        return v.reshape(tile_r // 8, 8, LANES).sum(axis=0)

    if masked:
        is_last = pl.program_id(0) == pl.num_programs(0) - 1

        @pl.when(jnp.logical_not(is_last))
        def _():
            o_ref[...] = reduce_to_8x128(q)

        @pl.when(is_last)
        def _():
            # Rows past the logical end of the array hold unspecified data;
            # select (not arithmetic) so NaN/Inf never propagates.
            row_ids = jax.lax.broadcasted_iota(jnp.int32, (tile_r, LANES), 0)
            o_ref[...] = reduce_to_8x128(jnp.where(row_ids < rem, q, 0.0))
    else:
        o_ref[...] = reduce_to_8x128(q)


def _bce_partials(x2, t2):
    rows = x2.shape[0]
    gen = _tpu_generation()

    # Double-buffered input-byte budget per grid step (both inputs together).
    budget = (16 << 20) if gen >= 6 else (8 << 20)  # v5e default scoped = 16 MiB
    bytes_per_row = LANES * (x2.dtype.itemsize + t2.dtype.itemsize)
    max_rows = max(8, (budget // (2 * bytes_per_row)) // 8 * 8)

    tile_r = min(max_rows, _round_up(rows, 8))
    if gen >= 7:
        # Keep grid >= 2 so both v7x TensorCores stay fed for mid-size inputs.
        tile_r = min(tile_r, max(8, _round_up(pl.cdiv(rows, 2), 8)))

    grid = pl.cdiv(rows, tile_r)
    masked = (rows % tile_r) != 0
    rem = rows % tile_r if masked else tile_r

    # 2 inputs x 2 pipeline buffers + headroom for outputs/compiler scratch;
    # capped well under v7x's 32 MiB default scoped / 64 MiB physical VMEM.
    vmem_limit = min(28 << 20, max(16 << 20, 2 * tile_r * bytes_per_row + (4 << 20)))

    kernel = functools.partial(_bce_kernel, tile_r=tile_r, masked=masked, rem=rem)
    tile_spec = pl.BlockSpec((tile_r, LANES), lambda i: (i, 0))

    return pl.pallas_call(
        kernel,
        out_shape=jax.ShapeDtypeStruct((grid * 8, LANES), jnp.float32),
        grid=(grid,),
        in_specs=[tile_spec, tile_spec],
        out_specs=pl.BlockSpec((8, LANES), lambda i: (i, 0)),
        compiler_params=pltpu.CompilerParams(
            dimension_semantics=("parallel",),  # independent blocks; 2-TC on v7x
            vmem_limit_bytes=vmem_limit,
        ),
    )(x2, t2)


@jax.jit
def bce_loss(inputs, targets):
    """Mean binary cross-entropy over all elements (any matching shapes)."""
    x = inputs.reshape(-1)
    t = targets.reshape(-1)
    n = x.shape[0]

    if n == 0:
        # Matches PyTorch's mean-reduction over an empty tensor (0/0).
        return jnp.float32(jnp.nan)

    rows = n // LANES
    tail = n - rows * LANES

    total = jnp.float32(0.0)
    if tail:
        # <= 127 trailing elements: tiny, plain JAX, no full-array copy/pad.
        total = total + jnp.sum(_bce_pos(x[rows * LANES:], t[rows * LANES:]))
    if rows:
        # Lane-aligned prefix; the reshape is free when tail == 0 (common case).
        x2 = x[: rows * LANES].reshape(rows, LANES)
        t2 = t[: rows * LANES].reshape(rows, LANES)
        total = total + jnp.sum(_bce_partials(x2, t2))

    # Single negation + 1/N scale, outside the kernel.
    return -total / n


def _bce_ref(inputs, targets):
    x = inputs.reshape(-1).astype(jnp.float32)
    t = targets.reshape(-1).astype(jnp.float32)
    log_x = jnp.maximum(jnp.log(x), -100.0)
    log_1mx = jnp.maximum(jnp.log1p(-x), -100.0)
    return jnp.mean(-(t * log_x + (1.0 - t) * log_1mx))


if __name__ == "__main__":
    key = jax.random.PRNGKey(0)
    k1, k2, k3, k4 = jax.random.split(key, 4)

    # Lane-aligned NCHW-like case (2*4*16*16 = 2048 elements).
    shape = (2, 4, 16, 16)
    inputs = jax.nn.sigmoid(jax.random.normal(k1, shape, jnp.float32))  # in (0,1)
    targets = jax.random.uniform(k2, shape, jnp.float32)                # in [0,1]
    loss = bce_loss(inputs, targets)
    jax.block_until_ready(loss)
    ref = _bce_ref(inputs, targets)
    assert jnp.allclose(loss, ref, rtol=1e-5, atol=1e-6), (loss, ref)

    # Unaligned flat length (600 = 4 full lane-rows + 88-element tail).
    shape2 = (2, 3, 100)
    inputs2 = jax.nn.sigmoid(jax.random.normal(k3, shape2, jnp.float32))
    targets2 = jax.random.uniform(k4, shape2, jnp.float32)
    loss2 = bce_loss(inputs2, targets2)
    jax.block_until_ready(loss2)
    ref2 = _bce_ref(inputs2, targets2)
    assert jnp.allclose(loss2, ref2, rtol=1e-5, atol=1e-6), (loss2, ref2)

    print("KERNEL_OK")
</pallas_src>

<mosaic_0001>
module attributes {stable_mosaic.version = 11 : i64} {
  func.func @_bce_kernel(%arg0: i32, %arg1: memref<16x128xf32, #tpu.memory_space<vmem>>, %arg2: memref<16x128xf32, #tpu.memory_space<vmem>>, %arg3: memref<8x128xf32, #tpu.memory_space<vmem>>) attributes {dimension_semantics = [#tpu.dimension_semantics<parallel>], iteration_bounds = array<i64: 1>, scalar_prefetch = 0 : i64, scratch_operands = 0 : i64, tpu.core_type = #tpu.core_type<tc>, window_params = [{transform_indices = @transform_0, window_bounds = array<i64: 16, 128>}, {transform_indices = @transform_1, window_bounds = array<i64: 16, 128>}, {transform_indices = @transform_2, window_bounds = array<i64: 8, 128>}]} {
    %c0 = arith.constant 0 : index
    %c0_0 = arith.constant 0 : index
    %0 = vector.load %arg1[%c0, %c0_0] : memref<16x128xf32, #tpu.memory_space<vmem>>, vector<16x128xf32>
    %c0_1 = arith.constant 0 : index
    %c0_2 = arith.constant 0 : index
    %1 = vector.load %arg2[%c0_1, %c0_2] : memref<16x128xf32, #tpu.memory_space<vmem>>, vector<16x128xf32>
    %2 = math.log %0 : vector<16x128xf32>
    %cst = arith.constant -1.000000e+02 : f32
    %3 = vector.broadcast %cst : f32 to vector<16x128xf32>
    %4 = arith.maximumf %2, %3 : vector<16x128xf32>
    %cst_3 = arith.constant 0.000000e+00 : f32
    %5 = vector.broadcast %cst_3 : f32 to vector<16x128xf32>
    %6 = arith.subf %5, %0 : vector<16x128xf32>
    %7 = math.log1p %6 : vector<16x128xf32>
    %cst_4 = arith.constant -1.000000e+02 : f32
    %8 = vector.broadcast %cst_4 : f32 to vector<16x128xf32>
    %9 = arith.maximumf %7, %8 : vector<16x128xf32>
    %10 = arith.subf %4, %9 : vector<16x128xf32>
    %11 = arith.mulf %1, %10 : vector<16x128xf32>
    %12 = arith.addf %9, %11 : vector<16x128xf32>
    %13 = vector.shape_cast %12 : vector<16x128xf32> to vector<2x8x128xf32>
    %cst_5 = arith.constant dense<0.000000e+00> : vector<8x128xf32>
    %14 = vector.multi_reduction <add>, %13, %cst_5 [0] : vector<2x8x128xf32> to vector<8x128xf32>
    %c0_6 = arith.constant 0 : index
    %c0_7 = arith.constant 0 : index
    %15 = vector.load %arg3[%c0_6, %c0_7] : memref<8x128xf32, #tpu.memory_space<vmem>>, vector<8x128xf32>
    tpu.vector_store %arg3[%c0_6, %c0_7], %14 {strides = array<i32>} : memref<8x128xf32, #tpu.memory_space<vmem>>, vector<8x128xf32>,
    return
  }
  func.func @transform_0(%arg0: i32) -> (i32, i32) {
    %c0_i32 = arith.constant 0 : i32
    %c0_i32_0 = arith.constant 0 : i32
    return %arg0, %c0_i32 : i32, i32
  }
  func.func @transform_1(%arg0: i32) -> (i32, i32) {
    %c0_i32 = arith.constant 0 : i32
    %c0_i32_0 = arith.constant 0 : i32
    return %arg0, %c0_i32 : i32, i32
  }
  func.func @transform_2(%arg0: i32) -> (i32, i32) {
    %c0_i32 = arith.constant 0 : i32
    %c0_i32_0 = arith.constant 0 : i32
    return %arg0, %c0_i32 : i32, i32
  }
}

</mosaic_0001>

<llo_original>
// kernel: bce_loss.1
$region0: #{bce_loss.1}
  #allocation0 [shape = 'u32[]', space=smem, size = 0x4, offset = 0x4, fixed_abs, tag = 'smem constant byte address 0x4 - core index']
  #allocation1 [shape = 'u32[144,128]{1,0:T(1,128)}', space=vmem, size = 0x12000, scoped, tag = 'internal scratch']
  %s0 = inlined_call_operand.vmem [shape: f32[16,128], index: 0, kind: input, shape index: {}]
  %s1 = inlined_call_operand.vmem [shape: f32[16,128], index: 1, kind: input, shape index: {}]
  %s2 = inlined_call_operand.vmem [shape: f32[8,128], index: 2, kind: output, shape index: {}]
  %s3 = sld [smem:[#allocation0]]
  $region18: #{bce_loss.1} parent=0
    _
  %s5 = ssub.s32 1, %s3
  %s6 = scalar_select 0, %s5, %s3
  // Predicated region
  $region2: #{bce_loss.1} parent=0 // pred_check
    _
  $region3: #{bce_loss.1} parent=0 // pred_check_branch
    %8 = sbr.rel (0) target = $region5
  $region4: #{bce_loss.1} parent=0 // pred_region
    _
  $region5: #{bce_loss.1} parent=0 // pred_fallthru
    _
  // Predicated region
  $region6: #{bce_loss.1} parent=0 // pred_check
    _
  $region7: #{bce_loss.1} parent=0 // pred_check_branch
    %10 = sbr.rel (0) target = $region9
  $region8: #{bce_loss.1} parent=0 // pred_region
    _
  $region9: #{bce_loss.1} parent=0 // pred_fallthru
    _
  %v11 = vld [vmem:[%s0] sm:$0xff]
  %v12 = vld [vmem:[%s0 + $0x8] sm:$0xff]
  %v13 = vld [vmem:[%s1] sm:$0xff]
  %v14 = vld [vmem:[%s1 + $0x8] sm:$0xff]
  %v15 = vlog2.pop %v11
  %v16 = vmul.f32 %v15, 0.6931472
  %v17 = vlog2.pop %v12
  %v18 = vmul.f32 %v17, 0.6931472
  %v19 = vmax.f32 %v16, -100.0
  %v20 = vmax.f32 %v18, -100.0
  %v21 = vsub.f32 0.0, %v11
  %v22 = vsub.f32 0.0, %v12
  %v23 = vadd.f32 %v21, 1.0
  %v24 = vlog2.pop %v23
  %v25 = vmul.f32 %v24, 0.6931472
  %v26 = vmul.f32 -0.5, %v21
  %v27 = vadd.f32 %v26, 1.0
  %v28 = vmul.f32 %v27, %v21
  %v29 = vand.u32 2147483647, %v21
  %vm30 = vcmp.lt.f32.partialorder %v29, 0.0004427343
  %v31 = vsel %vm30, %v28, %v25
  %v32 = vadd.f32 %v22, 1.0
  %v33 = vlog2.pop %v32
  %v34 = vmul.f32 %v33, 0.6931472
  %v35 = vmul.f32 -0.5, %v22
  %v36 = vadd.f32 %v35, 1.0
  %v37 = vmul.f32 %v36, %v22
  %v38 = vand.u32 2147483647, %v22
  %vm39 = vcmp.lt.f32.partialorder %v38, 0.0004427343
  %v40 = vsel %vm39, %v37, %v34
  %v41 = vmax.f32 %v31, -100.0
  %v42 = vmax.f32 %v40, -100.0
  %v43 = vsub.f32 %v19, %v41
  %v44 = vsub.f32 %v20, %v42
  %v45 = vmul.f32 %v13, %v43
  %v46 = vmul.f32 %v14, %v44
  %v47 = vadd.f32 %v41, %v45
  %v48 = vadd.f32 %v42, %v46
  %v49 = vadd.f32 %v47, %v48
  %50 = vst [vmem:[%s2] sm:$0xff] %v49
  // Predicated region
  $region10: #{bce_loss.1} parent=0 // pred_check
    _
  $region11: #{bce_loss.1} parent=0 // pred_check_branch
    %52 = sbr.rel (0) target = $region13
  $region12: #{bce_loss.1} parent=0 // pred_region
    _
  $region13: #{bce_loss.1} parent=0 // pred_fallthru
    _
  // Predicated region
  $region14: #{bce_loss.1} parent=0 // pred_check
    _
  $region15: #{bce_loss.1} parent=0 // pred_check_branch
    %54 = sbr.rel (0) target = $region17
  $region16: #{bce_loss.1} parent=0 // pred_region
    _
  $region17: #{bce_loss.1} parent=0 // pred_fallthru
    _

</llo_original>
